<compile_context>
chip_gen: v6e
topology: v6e:2x2x1
jax: 0.10.0
libtpu: 0.0.40
codegen_flags: <defaults>
</compile_context>

<pallas_src>
import functools

import jax
import jax.numpy as jnp
from jax import lax
from jax.experimental import pallas as pl
from jax.experimental.pallas import tpu as pltpu


def warp_residual_kernel(ix_ref, iy_ref, last_ref, curr_ref, w_ref, scale_ref,
                         bias_ref, out_ref, *, H, W):
    """One (batch, spatial-tile) grid point.

    ix_ref, iy_ref : (1, 1, TP)   pixel-space sample coords for this tile
    last_ref       : (1, C*H, W)  full source feature map (resident over tiles)
    curr_ref       : (1, C, TP)   current features, lane-dense spatial
    w_ref          : (C, 2C)      1x1 conv weight, cols = [curr chans ; warped chans]
    scale/bias_ref : (C, 1)       folded FrozenBatchNorm affine
    out_ref        : (1, C, TP)
    """
    C = curr_ref.shape[1]
    TP = curr_ref.shape[2]

    ix = ix_ref[0]                                  # (1, TP)
    iy = iy_ref[0]                                  # (1, TP)

    ix0 = jnp.floor(ix)
    iy0 = jnp.floor(iy)
    wx1 = ix - ix0
    wx0 = 1.0 - wx1
    wy1 = iy - iy0
    wy0 = 1.0 - wy1
    ix0i = ix0.astype(jnp.int32)                    # (1, TP)
    iy0i = iy0.astype(jnp.int32)

    # Factored bilinear weight maps.  Out-of-range corner indices simply match
    # no row of the iota -> implicit zeros padding (grid_sample 'zeros' mode).
    xlane = lax.broadcasted_iota(jnp.int32, (W, TP), 0)
    ylane = lax.broadcasted_iota(jnp.int32, (H, TP), 0)
    wxT = (jnp.where(xlane == ix0i, wx0, 0.0) +
           jnp.where(xlane == ix0i + 1, wx1, 0.0))          # (W, TP)
    wyT = (jnp.where(ylane == iy0i, wy0, 0.0) +
           jnp.where(ylane == iy0i + 1, wy1, 0.0))          # (H, TP)

    # Separable gather:
    #   x-interp on the MXU:  (C*H, W) @ (W, TP) -> (C*H, TP)
    #   y-interp on the VPU:  weighted reduce over H
    last2d = last_ref[0]                                     # (C*H, W)
    t = jnp.dot(last2d, wxT, preferred_element_type=jnp.float32)   # (C*H, TP)
    warped = jnp.sum(t.reshape(C, H, TP) * wyT[None, :, :], axis=1)  # (C, TP)

    # 1x1 conv on concat([curr, warped]) as a single channel matmul,
    # then folded FrozenBN + ReLU.
    feat = jnp.concatenate([curr_ref[0], warped], axis=0)    # (2C, TP)
    out = jnp.dot(w_ref[...], feat, preferred_element_type=jnp.float32)  # (C, TP)
    out = out * scale_ref[...] + bias_ref[...]
    out_ref[0] = jnp.maximum(out, 0.0).astype(out_ref.dtype)


def _choose_tile(P, cap=1024):
    if P % 128 != 0:
        return P
    tp = min(P, cap)
    tp -= tp % 128
    while P % tp:
        tp -= 128
    return tp


def warp_model_forward(last_nchw, curr_nchw, flow_nchw, conv_w, bn_w, bn_b,
                       bn_rm, bn_rv, eps=1e-5, tile_p=None):
    """JAX wrapper: NCHW in / NCHW out (matches the PyTorch module)."""
    N, C, H, W = last_nchw.shape
    P = H * W
    if tile_p is None:
        tile_p = _choose_tile(P)
    assert P % tile_p == 0
    num_tiles = P // tile_p

    f32 = jnp.float32
    # Lane-dense layouts — pure reshapes of the NCHW arrays (no transpose).
    last_chw = last_nchw.astype(f32).reshape(N, C * H, W)
    curr_ncp = curr_nchw.astype(f32).reshape(N, C, P)

    # Precompute pixel-space sampling coordinates (align_corners=True):
    #   grid = base(linspace(-1,1)) + flow ;  pix = (grid + 1)/2 * (size - 1)
    # NOTE: H==1 or W==1 would divide by zero (same as the PyTorch reference).
    xs = jnp.linspace(-1.0, 1.0, W, dtype=f32)
    ys = jnp.linspace(-1.0, 1.0, H, dtype=f32)
    base_x = jnp.broadcast_to(xs[None, :], (H, W))
    base_y = jnp.broadcast_to(ys[:, None], (H, W))
    gx = base_x[None] + flow_nchw[:, 0].astype(f32)          # (N, H, W)
    gy = base_y[None] + flow_nchw[:, 1].astype(f32)
    ix = ((gx + 1.0) * 0.5 * (W - 1)).reshape(N, 1, P)
    iy = ((gy + 1.0) * 0.5 * (H - 1)).reshape(N, 1, P)

    wmat = conv_w[:, :, 0, 0].astype(f32)                    # (C, 2C)
    scale = (bn_w * lax.rsqrt(bn_rv + eps)).astype(f32)
    bias = (bn_b.astype(f32) - bn_rm.astype(f32) * scale)
    scale = scale.reshape(C, 1)
    bias = bias.reshape(C, 1)

    kern = functools.partial(warp_residual_kernel, H=H, W=W)
    out_ncp = pl.pallas_call(
        kern,
        out_shape=jax.ShapeDtypeStruct((N, C, P), f32),
        grid=(N, num_tiles),
        in_specs=[
            pl.BlockSpec((1, 1, tile_p), lambda b, t: (b, 0, t)),      # ix
            pl.BlockSpec((1, 1, tile_p), lambda b, t: (b, 0, t)),      # iy
            pl.BlockSpec((1, C * H, W), lambda b, t: (b, 0, 0)),       # last (resident over t)
            pl.BlockSpec((1, C, tile_p), lambda b, t: (b, 0, t)),      # curr
            pl.BlockSpec((C, 2 * C), lambda b, t: (0, 0)),             # conv weight
            pl.BlockSpec((C, 1), lambda b, t: (0, 0)),                 # bn scale
            pl.BlockSpec((C, 1), lambda b, t: (0, 0)),                 # bn bias
        ],
        out_specs=pl.BlockSpec((1, C, tile_p), lambda b, t: (b, 0, t)),
        compiler_params=pltpu.CompilerParams(
            dimension_semantics=("parallel", "parallel"),
            vmem_limit_bytes=48 * 1024 * 1024),
    )(ix, iy, last_chw, curr_ncp, wmat, scale, bias)

    return out_ncp.reshape(N, C, H, W)


# ---------------- pure-JAX reference (for verification only) ----------------

def _grid_sample_bilinear_ref(inp, grid):
    # inp (N,C,H,W), grid (N,H,W,2); bilinear, align_corners=True, zeros padding
    N, C, H, W = inp.shape
    x = (grid[..., 0] + 1.0) * 0.5 * (W - 1)
    y = (grid[..., 1] + 1.0) * 0.5 * (H - 1)
    x0 = jnp.floor(x); x1 = x0 + 1.0
    y0 = jnp.floor(y); y1 = y0 + 1.0
    wx1 = x - x0; wx0 = 1.0 - wx1
    wy1 = y - y0; wy0 = 1.0 - wy1
    flat = inp.reshape(N, C, H * W)

    def gather(xc, yc, wgt):
        valid = ((xc >= 0) & (xc <= W - 1) & (yc >= 0) & (yc <= H - 1))
        xq = jnp.clip(xc, 0, W - 1).astype(jnp.int32)
        yq = jnp.clip(yc, 0, H - 1).astype(jnp.int32)
        idx = jnp.broadcast_to((yq * W + xq).reshape(N, 1, H * W), (N, C, H * W))
        vals = jnp.take_along_axis(flat, idx, axis=2).reshape(N, C, H, W)
        return vals * (wgt * valid.astype(jnp.float32))[:, None, :, :]

    return (gather(x0, y0, wx0 * wy0) + gather(x1, y0, wx1 * wy0) +
            gather(x0, y1, wx0 * wy1) + gather(x1, y1, wx1 * wy1))


def warp_model_ref(last, curr, flow, conv_w, bn_w, bn_b, bn_rm, bn_rv, eps=1e-5):
    N, C, H, W = last.shape
    ys = jnp.linspace(-1.0, 1.0, H)
    xs = jnp.linspace(-1.0, 1.0, W)
    gy, gx = jnp.meshgrid(ys, xs, indexing="ij")
    base = jnp.stack([gx, gy], axis=-1)[None]                # (1,H,W,2)
    grid = base + jnp.transpose(flow, (0, 2, 3, 1))
    warped = _grid_sample_bilinear_ref(last, grid)
    concat = jnp.concatenate([curr, warped], axis=1)         # (N,2C,H,W)
    w2d = conv_w[:, :, 0, 0]                                 # (C, 2C)
    out = jnp.einsum("nihw,oi->nohw", concat, w2d, precision="highest")
    scale = bn_w * lax.rsqrt(bn_rv + eps)
    bias = bn_b - bn_rm * scale
    out = out * scale[None, :, None, None] + bias[None, :, None, None]
    return jnp.maximum(out, 0.0)


if __name__ == "__main__":
    # inplane == outplane == C is required by the module's own forward
    # (concat of two C-channel maps feeds a 2*outplane -> outplane conv).
    N, C, H, W = 2, 8, 16, 16
    key = jax.random.PRNGKey(0)
    k1, k2, k3, k4, k5, k6, k7, k8 = jax.random.split(key, 8)

    last = jax.random.normal(k1, (N, C, H, W), jnp.float32)
    curr = jax.random.normal(k2, (N, C, H, W), jnp.float32)
    flow = 0.3 * jax.random.normal(k3, (N, 2, H, W), jnp.float32)

    # deterministic synthetic parameters (shapes from the module __init__)
    conv_w = 0.1 * jax.random.normal(k4, (C, 2 * C, 1, 1), jnp.float32)  # self.conv
    bn_w = 1.0 + 0.1 * jax.random.normal(k5, (C,), jnp.float32)          # self.bn.weight
    bn_b = 0.1 * jax.random.normal(k6, (C,), jnp.float32)                # self.bn.bias
    bn_rm = 0.1 * jax.random.normal(k7, (C,), jnp.float32)               # running_mean
    bn_rv = jnp.abs(jax.random.normal(k8, (C,), jnp.float32)) + 0.5      # running_var

    # tile_p=128 exercises the spatial-tile grid axis (grid = (2, 2)).
    out = warp_model_forward(last, curr, flow, conv_w, bn_w, bn_b, bn_rm, bn_rv,
                             tile_p=128)
    out = jax.block_until_ready(out)

    ref = warp_model_ref(last, curr, flow, conv_w, bn_w, bn_b, bn_rm, bn_rv)
    assert out.shape == (N, C, H, W)
    # DEFAULT MXU precision (single-pass bf16 operand rounding) vs. an f32
    # "highest" reference -> allow a few e-3 of rounding; logic bugs would be O(1).
    max_err = float(jnp.max(jnp.abs(out - ref)))
    assert max_err < 3e-2, f"max abs error {max_err}"
    print("KERNEL_OK")
</pallas_src>

<mosaic_0001>
module attributes {stable_mosaic.version = 11 : i64} {
  func.func @warp_residual_kernel(%arg0: i32, %arg1: i32, %arg2: memref<1x1x128xf32, #tpu.memory_space<vmem>>, %arg3: memref<1x1x128xf32, #tpu.memory_space<vmem>>, %arg4: memref<1x128x16xf32, #tpu.memory_space<vmem>>, %arg5: memref<1x8x128xf32, #tpu.memory_space<vmem>>, %arg6: memref<8x16xf32, #tpu.memory_space<vmem>>, %arg7: memref<8x1xf32, #tpu.memory_space<vmem>>, %arg8: memref<8x1xf32, #tpu.memory_space<vmem>>, %arg9: memref<1x8x128xf32, #tpu.memory_space<vmem>>) attributes {dimension_semantics = [#tpu.dimension_semantics<parallel>, #tpu.dimension_semantics<parallel>], iteration_bounds = array<i64: 2, 2>, scalar_prefetch = 0 : i64, scratch_operands = 0 : i64, tpu.core_type = #tpu.core_type<tc>, window_params = [{transform_indices = @transform_0, window_bounds = array<i64: 1, 1, 128>}, {transform_indices = @transform_1, window_bounds = array<i64: 1, 1, 128>}, {transform_indices = @transform_2, window_bounds = array<i64: 1, 128, 16>}, {transform_indices = @transform_3, window_bounds = array<i64: 1, 8, 128>}, {pipeline_mode = #tpu.pipeline_mode<synchronous>, transform_indices = @transform_4, window_bounds = array<i64: 8, 16>}, {pipeline_mode = #tpu.pipeline_mode<synchronous>, transform_indices = @transform_5, window_bounds = array<i64: 8, 1>}, {pipeline_mode = #tpu.pipeline_mode<synchronous>, transform_indices = @transform_6, window_bounds = array<i64: 8, 1>}, {transform_indices = @transform_7, window_bounds = array<i64: 1, 8, 128>}]} {
    %c0 = arith.constant 0 : index
    %c0_0 = arith.constant 0 : index
    %c0_1 = arith.constant 0 : index
    %0 = vector.load %arg2[%c0, %c0_0, %c0_1] : memref<1x1x128xf32, #tpu.memory_space<vmem>>, vector<1x1x128xf32>
    %1 = vector.shape_cast %0 : vector<1x1x128xf32> to vector<1x128xf32>
    %c0_2 = arith.constant 0 : index
    %c0_3 = arith.constant 0 : index
    %c0_4 = arith.constant 0 : index
    %2 = vector.load %arg3[%c0_2, %c0_3, %c0_4] : memref<1x1x128xf32, #tpu.memory_space<vmem>>, vector<1x1x128xf32>
    %3 = vector.shape_cast %2 : vector<1x1x128xf32> to vector<1x128xf32>
    %4 = math.floor %1 : vector<1x128xf32>
    %5 = math.floor %3 : vector<1x128xf32>
    %6 = arith.subf %1, %4 : vector<1x128xf32>
    %cst = arith.constant 1.000000e+00 : f32
    %7 = vector.broadcast %cst : f32 to vector<1x128xf32>
    %8 = arith.subf %7, %6 : vector<1x128xf32>
    %9 = arith.subf %3, %5 : vector<1x128xf32>
    %cst_5 = arith.constant 1.000000e+00 : f32
    %10 = vector.broadcast %cst_5 : f32 to vector<1x128xf32>
    %11 = arith.subf %10, %9 : vector<1x128xf32>
    %12 = arith.fptosi %4 : vector<1x128xf32> to vector<1x128xi32>
    %13 = arith.fptosi %5 : vector<1x128xf32> to vector<1x128xi32>
    %14 = tpu.iota {dimensions = array<i32: 0>} : vector<16x128xi32>
    %15 = tpu.iota {dimensions = array<i32: 0>} : vector<16x128xi32>
    %16 = vector.broadcast %12 : vector<1x128xi32> to vector<16x128xi32>
    %17 = arith.cmpi eq, %14, %16 : vector<16x128xi32>
    %cst_6 = arith.constant 0.000000e+00 : f32
    %18 = vector.shape_cast %8 : vector<1x128xf32> to vector<1x128xf32>
    %19 = vector.broadcast %18 : vector<1x128xf32> to vector<16x128xf32>
    %20 = vector.broadcast %cst_6 : f32 to vector<16x128xf32>
    %21 = arith.select %17, %19, %20 : vector<16x128xi1>, vector<16x128xf32>
    %c1_i32 = arith.constant 1 : i32
    %22 = vector.broadcast %c1_i32 : i32 to vector<1x128xi32>
    %23 = arith.addi %12, %22 : vector<1x128xi32>
    %24 = vector.broadcast %23 : vector<1x128xi32> to vector<16x128xi32>
    %25 = arith.cmpi eq, %14, %24 : vector<16x128xi32>
    %cst_7 = arith.constant 0.000000e+00 : f32
    %26 = vector.shape_cast %6 : vector<1x128xf32> to vector<1x128xf32>
    %27 = vector.broadcast %26 : vector<1x128xf32> to vector<16x128xf32>
    %28 = vector.broadcast %cst_7 : f32 to vector<16x128xf32>
    %29 = arith.select %25, %27, %28 : vector<16x128xi1>, vector<16x128xf32>
    %30 = arith.addf %21, %29 : vector<16x128xf32>
    %31 = vector.broadcast %13 : vector<1x128xi32> to vector<16x128xi32>
    %32 = arith.cmpi eq, %15, %31 : vector<16x128xi32>
    %cst_8 = arith.constant 0.000000e+00 : f32
    %33 = vector.shape_cast %11 : vector<1x128xf32> to vector<1x128xf32>
    %34 = vector.broadcast %33 : vector<1x128xf32> to vector<16x128xf32>
    %35 = vector.broadcast %cst_8 : f32 to vector<16x128xf32>
    %36 = arith.select %32, %34, %35 : vector<16x128xi1>, vector<16x128xf32>
    %c1_i32_9 = arith.constant 1 : i32
    %37 = vector.broadcast %c1_i32_9 : i32 to vector<1x128xi32>
    %38 = arith.addi %13, %37 : vector<1x128xi32>
    %39 = vector.broadcast %38 : vector<1x128xi32> to vector<16x128xi32>
    %40 = arith.cmpi eq, %15, %39 : vector<16x128xi32>
    %cst_10 = arith.constant 0.000000e+00 : f32
    %41 = vector.shape_cast %9 : vector<1x128xf32> to vector<1x128xf32>
    %42 = vector.broadcast %41 : vector<1x128xf32> to vector<16x128xf32>
    %43 = vector.broadcast %cst_10 : f32 to vector<16x128xf32>
    %44 = arith.select %40, %42, %43 : vector<16x128xi1>, vector<16x128xf32>
    %45 = arith.addf %36, %44 : vector<16x128xf32>
    %c0_11 = arith.constant 0 : index
    %c0_12 = arith.constant 0 : index
    %c0_13 = arith.constant 0 : index
    %46 = vector.load %arg4[%c0_11, %c0_12, %c0_13] : memref<1x128x16xf32, #tpu.memory_space<vmem>>, vector<1x128x16xf32>
    %47 = vector.shape_cast %46 : vector<1x128x16xf32> to vector<128x16xf32>
    %cst_14 = arith.constant dense<0.000000e+00> : vector<128x128xf32>
    %48 = tpu.matmul %47, %30, %cst_14 {dimension_numbers = #tpu.dot_dimension_numbers<[1], [0], [0], [1], [0, 0, 1, 1], [], []>} : vector<128x16xf32>, vector<16x128xf32>, vector<128x128xf32> -> vector<128x128xf32>
    %49 = vector.shape_cast %48 : vector<128x128xf32> to vector<8x16x128xf32>
    %50 = vector.shape_cast %45 : vector<16x128xf32> to vector<1x16x128xf32>
    %51 = vector.broadcast %50 : vector<1x16x128xf32> to vector<8x16x128xf32>
    %52 = arith.mulf %49, %51 : vector<8x16x128xf32>
    %cst_15 = arith.constant dense<0.000000e+00> : vector<8x128xf32>
    %53 = vector.multi_reduction <add>, %52, %cst_15 [1] : vector<8x16x128xf32> to vector<8x128xf32>
    %c0_16 = arith.constant 0 : index
    %c0_17 = arith.constant 0 : index
    %c0_18 = arith.constant 0 : index
    %54 = vector.load %arg5[%c0_16, %c0_17, %c0_18] : memref<1x8x128xf32, #tpu.memory_space<vmem>>, vector<1x8x128xf32>
    %55 = vector.shape_cast %54 : vector<1x8x128xf32> to vector<8x128xf32>
    %56 = tpu.concatenate %55, %53 in 0 : vector<8x128xf32>, vector<8x128xf32> -> vector<16x128xf32>
    %c0_19 = arith.constant 0 : index
    %c0_20 = arith.constant 0 : index
    %57 = vector.load %arg6[%c0_19, %c0_20] : memref<8x16xf32, #tpu.memory_space<vmem>>, vector<8x16xf32>
    %cst_21 = arith.constant dense<0.000000e+00> : vector<8x128xf32>
    %58 = tpu.matmul %57, %56, %cst_21 {dimension_numbers = #tpu.dot_dimension_numbers<[1], [0], [0], [1], [0, 0, 1, 1], [], []>} : vector<8x16xf32>, vector<16x128xf32>, vector<8x128xf32> -> vector<8x128xf32>
    %c0_22 = arith.constant 0 : index
    %c0_23 = arith.constant 0 : index
    %59 = vector.load %arg7[%c0_22, %c0_23] : memref<8x1xf32, #tpu.memory_space<vmem>>, vector<8x1xf32>
    %60 = vector.broadcast %59 : vector<8x1xf32> to vector<8x128xf32>
    %61 = arith.mulf %58, %60 : vector<8x128xf32>
    %c0_24 = arith.constant 0 : index
    %c0_25 = arith.constant 0 : index
    %62 = vector.load %arg8[%c0_24, %c0_25] : memref<8x1xf32, #tpu.memory_space<vmem>>, vector<8x1xf32>
    %63 = vector.broadcast %62 : vector<8x1xf32> to vector<8x128xf32>
    %64 = arith.addf %61, %63 : vector<8x128xf32>
    %cst_26 = arith.constant 0.000000e+00 : f32
    %65 = vector.broadcast %cst_26 : f32 to vector<8x128xf32>
    %66 = arith.maximumf %64, %65 : vector<8x128xf32>
    %c0_27 = arith.constant 0 : index
    %c0_28 = arith.constant 0 : index
    %c0_29 = arith.constant 0 : index
    %67 = vector.load %arg9[%c0_27, %c0_28, %c0_29] : memref<1x8x128xf32, #tpu.memory_space<vmem>>, vector<1x8x128xf32>
    %68 = vector.shape_cast %67 : vector<1x8x128xf32> to vector<8x128xf32>
    %69 = vector.shape_cast %66 : vector<8x128xf32> to vector<1x8x128xf32>
    tpu.vector_store %arg9[%c0_27, %c0_28, %c0_29], %69 {strides = array<i32>} : memref<1x8x128xf32, #tpu.memory_space<vmem>>, vector<1x8x128xf32>,
    return
  }
  func.func @transform_0(%arg0: i32, %arg1: i32) -> (i32, i32, i32) {
    %c0_i32 = arith.constant 0 : i32
    %c0_i32_0 = arith.constant 0 : i32
    return %arg0, %c0_i32, %arg1 : i32, i32, i32
  }
  func.func @transform_1(%arg0: i32, %arg1: i32) -> (i32, i32, i32) {
    %c0_i32 = arith.constant 0 : i32
    %c0_i32_0 = arith.constant 0 : i32
    return %arg0, %c0_i32, %arg1 : i32, i32, i32
  }
  func.func @transform_2(%arg0: i32, %arg1: i32) -> (i32, i32, i32) {
    %c0_i32 = arith.constant 0 : i32
    %c0_i32_0 = arith.constant 0 : i32
    %c0_i32_1 = arith.constant 0 : i32
    return %arg0, %c0_i32, %c0_i32_0 : i32, i32, i32
  }
  func.func @transform_3(%arg0: i32, %arg1: i32) -> (i32, i32, i32) {
    %c0_i32 = arith.constant 0 : i32
    %c0_i32_0 = arith.constant 0 : i32
    return %arg0, %c0_i32, %arg1 : i32, i32, i32
  }
  func.func @transform_4(%arg0: i32, %arg1: i32) -> (i32, i32) {
    %c0_i32 = arith.constant 0 : i32
    %c0_i32_0 = arith.constant 0 : i32
    %c0_i32_1 = arith.constant 0 : i32
    return %c0_i32, %c0_i32_0 : i32, i32
  }
  func.func @transform_5(%arg0: i32, %arg1: i32) -> (i32, i32) {
    %c0_i32 = arith.constant 0 : i32
    %c0_i32_0 = arith.constant 0 : i32
    %c0_i32_1 = arith.constant 0 : i32
    return %c0_i32, %c0_i32_0 : i32, i32
  }
  func.func @transform_6(%arg0: i32, %arg1: i32) -> (i32, i32) {
    %c0_i32 = arith.constant 0 : i32
    %c0_i32_0 = arith.constant 0 : i32
    %c0_i32_1 = arith.constant 0 : i32
    return %c0_i32, %c0_i32_0 : i32, i32
  }
  func.func @transform_7(%arg0: i32, %arg1: i32) -> (i32, i32, i32) {
    %c0_i32 = arith.constant 0 : i32
    %c0_i32_0 = arith.constant 0 : i32
    return %arg0, %c0_i32, %arg1 : i32, i32, i32
  }
}

</mosaic_0001>

<llo_original>
// kernel: tpu_custom_call.1
$region0: #{tpu_custom_call.1}
  #allocation0 [shape = 'u32[]', space=smem, size = 0x4, offset = 0x4, fixed_abs, tag = 'smem constant byte address 0x4 - core index']
  #allocation1 [shape = 'u32[144,128]{1,0:T(1,128)}', space=vmem, size = 0x12000, scoped, tag = 'internal scratch']
  %s0 = inlined_call_operand.vmem [shape: f32[2,1,256], index: 0, kind: input, shape index: {}]
  %s1 = inlined_call_operand.vmem [shape: f32[2,1,256], index: 1, kind: input, shape index: {}]
  %s2 = inlined_call_operand.vmem [shape: f32[2,128,16], index: 2, kind: input, shape index: {}]
  %s3 = inlined_call_operand.vmem [shape: f32[2,8,256], index: 3, kind: input, shape index: {}]
  %s4 = inlined_call_operand.vmem [shape: f32[8,16], index: 4, kind: input, shape index: {}]
  %s5 = inlined_call_operand.vmem [shape: f32[8,1], index: 5, kind: input, shape index: {}]
  %s6 = inlined_call_operand.vmem [shape: f32[8,1], index: 6, kind: input, shape index: {}]
  %s7 = inlined_call_operand.hbm [shape: f32[2,8,256], index: 7, kind: output, shape index: {}]
  %s8 = sld [smem:[#allocation0]]
  $region61: #{tpu_custom_call.1} parent=0
    _
  %s10 = ssub.s32 1, %s8
  %s11 = scalar_select 0, %s10, %s8
  $region1: #{tpu_custom_call.1} parent=0
    #allocation2 [shape = 'u8[8192]{0}', space=vmem, size = 0x2000, scoped, tag = 'output window, operand 0']
    #allocation3 [shape = 's32[2]{0}', space=sflag, size = 0x8, scoped, tag = 'scoped memory for tpu_custom_call.1']
    %12 = vsyncpa [#allocation3], 0
    %s13 = scalar_lea.sflag [#allocation3], 1
    %14 = vsyncpa %s13, 0
    loop: start=0, step=1, limit=6
    $region2: #{tpu_custom_call.1} parent=1 // loop_pre_header
      _
    $region3: #{tpu_custom_call.1} parent=1 // loop_header
      %s16 = sphi 0, %s20
      %p17 = scmp.ge.s32.totalorder %s16, 6
      %s23 = sphi 0, %s35
      %s24 = sphi 0, %s31
      %s25 = sphi 0, %s23
      %s26 = sphi 0, %s24
      %s27 = sphi 0, %s25
      %s28 = sphi 0, %s26
      %s40 = sphi 0, %s42
      %s43 = sphi 0, %s40
      %s44 = sphi 0, %s43
      %s60 = sphi 0, %s44
      %s68 = sphi 0, %s70
      %s71 = sphi 0, %s68
      %s72 = sphi 0, %s71
      %s88 = sphi 0, %s72
      %s94 = sphi 0, %s96
      %s97 = sphi 0, %s94
      %s98 = sphi 0, %s97
      %s114 = sphi 0, %s98
      %s122 = sphi 0, %s124
      %s125 = sphi 0, %s122
      %s126 = sphi 0, %s125
      %s142 = sphi 0, %s126
      %s146 = sphi 0, %s146
      %s148 = sphi 0, %s146
      %s149 = sphi 0, %s148
      %s163 = sphi 0, %s149
      %s167 = sphi 0, %s167
      %s169 = sphi 0, %s167
      %s170 = sphi 0, %s169
      %s184 = sphi 0, %s170
      %s188 = sphi 0, %s188
      %s190 = sphi 0, %s188
      %s191 = sphi 0, %s190
      %s205 = sphi 0, %s191
      %s213 = sphi 0, %s215
      %s216 = sphi 0, %s213
      %s217 = sphi 0, %s216
      %s233 = sphi 0, %s217
    $region4: #{tpu_custom_call.1} parent=1 // loop_header_branch
      %19 = sbr.rel (%p17) target = $region8
    $region5: #{tpu_custom_call.1} parent=1 // loop_body
      %s21 = ssub.s32 %s16, 1
      %s22 = ssub.s32 %s16, 2
      %s29 = sadd.s32 1, %s24
      %p30 = scmp.ge.s32.totalorder %s29, 2
      %s31 = scalar_select %p30, 0, %s29
      %s32 = sadd.s32 1, %s23
      %s33 = scalar_select %p30, %s32, %s23
      %p34 = scmp.ge.s32.totalorder %s33, 2
      %s35 = scalar_select %p34, 0, %s33
      %s36 = ssub.s32 %s23, %s35
      %s37 = ssub.s32 %s24, %s31
      %s38 = sor.u32 %s36, %s37
      %p39 = scmp.eq.s32.totalorder %s38, 0
      %s41 = sadd.s32 %s40, 1
      %s42 = scalar_select %p39, %s40, %s41
      %p45 = pneg %p39
      %p46 = scmp.eq.s32.totalorder %s16, 3
      %p47 = por %p45, %p46
      %p48 = scmp.ne.s32.totalorder %s40, %s43
      %p49 = scmp.eq.s32.totalorder %s16, 0
      %p50 = por %p48, %p49
      %p51 = scmp.ne.s32.totalorder %s40, %s43
      %p52 = scmp.eq.s32.totalorder %s21, 3
      %p53 = por %p51, %p52
      %p54 = scmp.ne.s32.totalorder %s43, %s44
      %p55 = scmp.eq.s32.totalorder %s21, 0
      %p56 = por %p54, %p55
      %p57 = scmp.ne.s32.totalorder %s43, %s44
      %p58 = scmp.eq.s32.totalorder %s22, 3
      %p59 = por %p57, %p58
      %p61 = scmp.ne.s32.totalorder %s44, %s60
      %p62 = scmp.eq.s32.totalorder %s22, 0
      %p63 = por %p61, %p62
      %s64 = ssub.s32 %s23, %s35
      %s65 = ssub.s32 %s24, %s31
      %s66 = sor.u32 %s64, %s65
      %p67 = scmp.eq.s32.totalorder %s66, 0
      %s69 = sadd.s32 %s68, 1
      %s70 = scalar_select %p67, %s68, %s69
      %p73 = pneg %p67
      %p74 = scmp.eq.s32.totalorder %s16, 3
      %p75 = por %p73, %p74
      %p76 = scmp.ne.s32.totalorder %s68, %s71
      %p77 = scmp.eq.s32.totalorder %s16, 0
      %p78 = por %p76, %p77
      %p79 = scmp.ne.s32.totalorder %s68, %s71
      %p80 = scmp.eq.s32.totalorder %s21, 3
      %p81 = por %p79, %p80
      %p82 = scmp.ne.s32.totalorder %s71, %s72
      %p83 = scmp.eq.s32.totalorder %s21, 0
      %p84 = por %p82, %p83
      %p85 = scmp.ne.s32.totalorder %s71, %s72
      %p86 = scmp.eq.s32.totalorder %s22, 3
      %p87 = por %p85, %p86
      %p89 = scmp.ne.s32.totalorder %s72, %s88
      %p90 = scmp.eq.s32.totalorder %s22, 0
      %p91 = por %p89, %p90
      %s92 = ssub.s32 %s23, %s35
      %p93 = scmp.eq.s32.totalorder %s92, 0
      %s95 = sadd.s32 %s94, 1
      %s96 = scalar_select %p93, %s94, %s95
      %p99 = pneg %p93
      %p100 = scmp.eq.s32.totalorder %s16, 3
      %p101 = por %p99, %p100
      %p102 = scmp.ne.s32.totalorder %s94, %s97
      %p103 = scmp.eq.s32.totalorder %s16, 0
      %p104 = por %p102, %p103
      %p105 = scmp.ne.s32.totalorder %s94, %s97
      %p106 = scmp.eq.s32.totalorder %s21, 3
      %p107 = por %p105, %p106
      %p108 = scmp.ne.s32.totalorder %s97, %s98
      %p109 = scmp.eq.s32.totalorder %s21, 0
      %p110 = por %p108, %p109
      %p111 = scmp.ne.s32.totalorder %s97, %s98
      %p112 = scmp.eq.s32.totalorder %s22, 3
      %p113 = por %p111, %p112
      %p115 = scmp.ne.s32.totalorder %s98, %s114
      %p116 = scmp.eq.s32.totalorder %s22, 0
      %p117 = por %p115, %p116
      %s118 = ssub.s32 %s23, %s35
      %s119 = ssub.s32 %s24, %s31
      %s120 = sor.u32 %s118, %s119
      %p121 = scmp.eq.s32.totalorder %s120, 0
      %s123 = sadd.s32 %s122, 1
      %s124 = scalar_select %p121, %s122, %s123
      %p127 = pneg %p121
      %p128 = scmp.eq.s32.totalorder %s16, 3
      %p129 = por %p127, %p128
      %p130 = scmp.ne.s32.totalorder %s122, %s125
      %p131 = scmp.eq.s32.totalorder %s16, 0
      %p132 = por %p130, %p131
      %p133 = scmp.ne.s32.totalorder %s122, %s125
      %p134 = scmp.eq.s32.totalorder %s21, 3
      %p135 = por %p133, %p134
      %p136 = scmp.ne.s32.totalorder %s125, %s126
      %p137 = scmp.eq.s32.totalorder %s21, 0
      %p138 = por %p136, %p137
      %p139 = scmp.ne.s32.totalorder %s125, %s126
      %p140 = scmp.eq.s32.totalorder %s22, 3
      %p141 = por %p139, %p140
      %p143 = scmp.ne.s32.totalorder %s126, %s142
      %p144 = scmp.eq.s32.totalorder %s22, 0
      %p145 = por %p143, %p144
      %s147 = sadd.s32 %s146, 1
      %p150 = scmp.eq.s32.totalorder %s16, 3
      %p151 = scmp.ne.s32.totalorder %s146, %s148
      %p152 = scmp.eq.s32.totalorder %s16, 0
      %p153 = por %p151, %p152
      %p154 = scmp.ne.s32.totalorder %s146, %s148
      %p155 = scmp.eq.s32.totalorder %s21, 3
      %p156 = por %p154, %p155
      %p157 = scmp.ne.s32.totalorder %s148, %s149
      %p158 = scmp.eq.s32.totalorder %s21, 0
      %p159 = por %p157, %p158
      %p160 = scmp.ne.s32.totalorder %s148, %s149
      %p161 = scmp.eq.s32.totalorder %s22, 3
      %p162 = por %p160, %p161
      %p164 = scmp.ne.s32.totalorder %s149, %s163
      %p165 = scmp.eq.s32.totalorder %s22, 0
      %p166 = por %p164, %p165
      %s168 = sadd.s32 %s167, 1
      %p171 = scmp.eq.s32.totalorder %s16, 3
      %p172 = scmp.ne.s32.totalorder %s167, %s169
      %p173 = scmp.eq.s32.totalorder %s16, 0
      %p174 = por %p172, %p173
      %p175 = scmp.ne.s32.totalorder %s167, %s169
      %p176 = scmp.eq.s32.totalorder %s21, 3
      %p177 = por %p175, %p176
      %p178 = scmp.ne.s32.totalorder %s169, %s170
      %p179 = scmp.eq.s32.totalorder %s21, 0
      %p180 = por %p178, %p179
      %p181 = scmp.ne.s32.totalorder %s169, %s170
      %p182 = scmp.eq.s32.totalorder %s22, 3
      %p183 = por %p181, %p182
      %p185 = scmp.ne.s32.totalorder %s170, %s184
      %p186 = scmp.eq.s32.totalorder %s22, 0
      %p187 = por %p185, %p186
      %s189 = sadd.s32 %s188, 1
      %p192 = scmp.eq.s32.totalorder %s16, 3
      %p193 = scmp.ne.s32.totalorder %s188, %s190
      %p194 = scmp.eq.s32.totalorder %s16, 0
      %p195 = por %p193, %p194
      %p196 = scmp.ne.s32.totalorder %s188, %s190
      %p197 = scmp.eq.s32.totalorder %s21, 3
      %p198 = por %p196, %p197
      %p199 = scmp.ne.s32.totalorder %s190, %s191
      %p200 = scmp.eq.s32.totalorder %s21, 0
      %p201 = por %p199, %p200
      %p202 = scmp.ne.s32.totalorder %s190, %s191
      %p203 = scmp.eq.s32.totalorder %s22, 3
      %p204 = por %p202, %p203
      %p206 = scmp.ne.s32.totalorder %s191, %s205
      %p207 = scmp.eq.s32.totalorder %s22, 0
      %p208 = por %p206, %p207
      %s209 = ssub.s32 %s23, %s35
      %s210 = ssub.s32 %s24, %s31
      %s211 = sor.u32 %s209, %s210
      %p212 = scmp.eq.s32.totalorder %s211, 0
      %s214 = sadd.s32 %s213, 1
      %s215 = scalar_select %p212, %s213, %s214
      %p218 = pneg %p212
      %p219 = scmp.eq.s32.totalorder %s16, 3
      %p220 = por %p218, %p219
      %p221 = scmp.ne.s32.totalorder %s213, %s216
      %p222 = scmp.eq.s32.totalorder %s16, 0
      %p223 = por %p221, %p222
      %p224 = scmp.ne.s32.totalorder %s213, %s216
      %p225 = scmp.eq.s32.totalorder %s21, 3
      %p226 = por %p224, %p225
      %p227 = scmp.ne.s32.totalorder %s216, %s217
      %p228 = scmp.eq.s32.totalorder %s21, 0
      %p229 = por %p227, %p228
      %p230 = scmp.ne.s32.totalorder %s216, %s217
      %p231 = scmp.eq.s32.totalorder %s22, 3
      %p232 = por %p230, %p231
      %p234 = scmp.ne.s32.totalorder %s217, %s233
      %p235 = scmp.eq.s32.totalorder %s22, 0
      %p236 = por %p234, %p235
      %p237 = scmp.le.s32.totalorder 1, %s16
      %p238 = scmp.lt.s32.totalorder %s16, 5
      %p239 = pnand %p237, %p238
      %p240 = pneg %p239
      // Predicated region
      $region9: #{tpu_custom_call.1} parent=5 // pred_check
        _
      $region10: #{tpu_custom_call.1} parent=5 // pred_check_branch
        %242 = sbr.rel (%p239) target = $region12
      $region11: #{tpu_custom_call.1} parent=5 // pred_region
        %s243 = ssub.s32 %s16, 1
        // Predicated region
        $region13: #{tpu_custom_call.1} parent=11 // pred_check
          %p244 = pneg %p159
        $region14: #{tpu_custom_call.1} parent=11 // pred_check_branch
          %246 = sbr.rel (%p244) target = $region16
        $region15: #{tpu_custom_call.1} parent=11 // pred_region
          _
        $region16: #{tpu_custom_call.1} parent=11 // pred_fallthru
          _
        // Predicated region
        $region17: #{tpu_custom_call.1} parent=11 // pred_check
          %p247 = pneg %p180
        $region18: #{tpu_custom_call.1} parent=11 // pred_check_branch
          %249 = sbr.rel (%p247) target = $region20
        $region19: #{tpu_custom_call.1} parent=11 // pred_region
          _
        $region20: #{tpu_custom_call.1} parent=11 // pred_fallthru
          _
        // Predicated region
        $region21: #{tpu_custom_call.1} parent=11 // pred_check
          %p250 = pneg %p201
        $region22: #{tpu_custom_call.1} parent=11 // pred_check_branch
          %252 = sbr.rel (%p250) target = $region24
        $region23: #{tpu_custom_call.1} parent=11 // pred_region
          _
        $region24: #{tpu_custom_call.1} parent=11 // pred_fallthru
          _
      $region12: #{tpu_custom_call.1} parent=5 // pred_fallthru
        _
      %p253 = scmp.lt.s32.totalorder %s16, 4
      // Predicated region
      $region25: #{tpu_custom_call.1} parent=5 // pred_check
        %p254 = pneg %p253
      $region26: #{tpu_custom_call.1} parent=5 // pred_check_branch
        %256 = sbr.rel (%p254) target = $region28
      $region27: #{tpu_custom_call.1} parent=5 // pred_region
        // Predicated region
        $region29: #{tpu_custom_call.1} parent=27 // pred_check
          %p257 = pneg %p50
        $region30: #{tpu_custom_call.1} parent=27 // pred_check_branch
          %259 = sbr.rel (%p257) target = $region32
        $region31: #{tpu_custom_call.1} parent=27 // pred_region
          %p260 = scmp.lt.s32.totalorder %s23, 1
          %s261 = scalar_select %p260, %s23, 1
          %p262 = scmp.lt.s32.totalorder %s24, 1
          %s263 = scalar_select %p262, %s24, 1
          %s264 = smul.addr %s261, 2
          %s265 = sadd.s32 %s263, %s264
          %s266 = scalar_lea.vmem %s0, %s265
        $region32: #{tpu_custom_call.1} parent=27 // pred_fallthru
          _
        // Predicated region
        $region33: #{tpu_custom_call.1} parent=27 // pred_check
          %p267 = pneg %p78
        $region34: #{tpu_custom_call.1} parent=27 // pred_check_branch
          %269 = sbr.rel (%p267) target = $region36
        $region35: #{tpu_custom_call.1} parent=27 // pred_region
          %p270 = scmp.lt.s32.totalorder %s23, 1
          %s271 = scalar_select %p270, %s23, 1
          %p272 = scmp.lt.s32.totalorder %s24, 1
          %s273 = scalar_select %p272, %s24, 1
          %s274 = smul.addr %s271, 2
          %s275 = sadd.s32 %s273, %s274
          %s276 = scalar_lea.vmem %s1, %s275
        $region36: #{tpu_custom_call.1} parent=27 // pred_fallthru
          _
        // Predicated region
        $region37: #{tpu_custom_call.1} parent=27 // pred_check
          %p277 = pneg %p104
        $region38: #{tpu_custom_call.1} parent=27 // pred_check_branch
          %279 = sbr.rel (%p277) target = $region40
        $region39: #{tpu_custom_call.1} parent=27 // pred_region
          %p280 = scmp.lt.s32.totalorder %s23, 1
          %s281 = scalar_select %p280, %s23, 1
          %s282 = smul.addr %s281, 16
          %s283 = smul.addr %s282, 8
          %s284 = scalar_lea.vmem %s2, %s283
        $region40: #{tpu_custom_call.1} parent=27 // pred_fallthru
          _
        // Predicated region
        $region41: #{tpu_custom_call.1} parent=27 // pred_check
          %p285 = pneg %p132
        $region42: #{tpu_custom_call.1} parent=27 // pred_check_branch
          %287 = sbr.rel (%p285) target = $region44
        $region43: #{tpu_custom_call.1} parent=27 // pred_region
          %p288 = scmp.lt.s32.totalorder %s23, 1
          %s289 = scalar_select %p288, %s23, 1
          %p290 = scmp.lt.s32.totalorder %s24, 1
          %s291 = scalar_select %p290, %s24, 1
          %s292 = smul.addr %s289, 2
          %s293 = sadd.s32 %s291, %s292
          %s294 = smul.addr %s293, 8
          %s295 = scalar_lea.vmem %s3, %s294
        $region44: #{tpu_custom_call.1} parent=27 // pred_fallthru
          _
      $region28: #{tpu_custom_call.1} parent=5 // pred_fallthru
        _
      %p296 = scmp.le.s32.totalorder 1, %s16
      %p297 = scmp.lt.s32.totalorder %s16, 5
      %p298 = pnand %p296, %p297
      %p299 = pneg %p298
      // Predicated region
      $region45: #{tpu_custom_call.1} parent=5 // pred_check
        _
      $region46: #{tpu_custom_call.1} parent=5 // pred_check_branch
        %301 = sbr.rel (%p298) target = $region48
      $region47: #{tpu_custom_call.1} parent=5 // pred_region
        %s302 = ssub.s32 %s16, 1
        %p303 = scmp.lt.s32.totalorder %s25, 1
        %s304 = scalar_select %p303, %s25, 1
        %p305 = scmp.lt.s32.totalorder %s26, 1
        %s306 = scalar_select %p305, %s26, 1
        %s307 = smul.addr %s304, 2
        %s308 = sadd.s32 %s306, %s307
        %s309 = scalar_lea.vmem %s0, %s308
        %p310 = pneg %p56
        %p311 = pneg %p53
        %p312 = scmp.lt.s32.totalorder %s25, 1
        %s313 = scalar_select %p312, %s25, 1
        %p314 = scmp.lt.s32.totalorder %s26, 1
        %s315 = scalar_select %p314, %s26, 1
        %s316 = smul.addr %s313, 2
        %s317 = sadd.s32 %s315, %s316
        %s318 = scalar_lea.vmem %s1, %s317
        %p319 = pneg %p84
        %p320 = pneg %p81
        %p321 = scmp.lt.s32.totalorder %s25, 1
        %s322 = scalar_select %p321, %s25, 1
        %s323 = smul.addr %s322, 16
        %s324 = smul.addr %s323, 8
        %s325 = scalar_lea.vmem %s2, %s324
        %p326 = pneg %p110
        %p327 = pneg %p107
        %p328 = scmp.lt.s32.totalorder %s25, 1
        %s329 = scalar_select %p328, %s25, 1
        %p330 = scmp.lt.s32.totalorder %s26, 1
        %s331 = scalar_select %p330, %s26, 1
        %s332 = smul.addr %s329, 2
        %s333 = sadd.s32 %s331, %s332
        %s334 = smul.addr %s333, 8
        %s335 = scalar_lea.vmem %s3, %s334
        %p336 = pneg %p138
        %p337 = pneg %p135
        %p338 = pneg %p159
        %p339 = pneg %p156
        %p340 = pneg %p180
        %p341 = pneg %p177
        %p342 = pneg %p201
        %p343 = pneg %p198
        %p344 = pneg %p229
        %p345 = pneg %p226
        %s346 = sand.u32 %s216, 1
        %s347 = scalar_lea.sflag [#allocation3], %s346
        %s348 = sand.u32 %s216, 1
        %s349 = smul.addr %s348, 8
        %s350 = scalar_lea.vmem [#allocation2], %s349
        %p351 = scmp.lt.s32.totalorder %s25, 1
        %s352 = scalar_select %p351, %s25, 1
        %p353 = scmp.lt.s32.totalorder %s26, 1
        %s354 = scalar_select %p353, %s26, 1
        %s355 = smul.addr %s352, 2
        %s356 = sadd.s32 %s354, %s355
        %s357 = scalar_lea.vmem %s0, %s356
        %p358 = scmp.lt.s32.totalorder %s25, 1
        %s359 = scalar_select %p358, %s25, 1
        %p360 = scmp.lt.s32.totalorder %s26, 1
        %s361 = scalar_select %p360, %s26, 1
        %s362 = smul.addr %s359, 2
        %s363 = sadd.s32 %s361, %s362
        %s364 = scalar_lea.vmem %s1, %s363
        %p365 = scmp.lt.s32.totalorder %s25, 1
        %s366 = scalar_select %p365, %s25, 1
        %s367 = smul.addr %s366, 16
        %s368 = smul.addr %s367, 8
        %s369 = scalar_lea.vmem %s2, %s368
        %p370 = scmp.lt.s32.totalorder %s25, 1
        %s371 = scalar_select %p370, %s25, 1
        %p372 = scmp.lt.s32.totalorder %s26, 1
        %s373 = scalar_select %p372, %s26, 1
        %s374 = smul.addr %s371, 2
        %s375 = sadd.s32 %s373, %s374
        %s376 = smul.addr %s375, 8
        %s377 = scalar_lea.vmem %s3, %s376
        %v378 = vld [vmem:[%s357] sm:$0x1]
        %v379 = vld [vmem:[%s364] sm:$0x1]
        %v380 = vfloor.f32 %v378
        %v381 = vfloor.f32 %v379
        %v382 = vsub.f32 %v378, %v380
        %v383 = vsub.f32 1.0, %v382
        %v384 = vsub.f32 %v379, %v381
        %v385 = vsub.f32 1.0, %v384
        %v386 = vcvt.f32.s32.to.zero.pseudo %v380
        %v387 = vcvt.f32.s32.to.zero.pseudo %v381
        %v388 = vlaneseq
        %v389 = vshrl.u32 %v388, 7
        %v390 = vadd.s32 %v389, 8
        %v391 = vlaneseq
        %v392 = vshrl.u32 %v391, 7
        %v393 = vsub.s32 0, %v392
        %v394 = vrot.slane %v386, %v393
        %vm395 = vcmp.eq.s32.totalorder %v389, %v394
        %vm396 = vcmp.eq.s32.totalorder %v390, %v394
        %v398 = vlaneseq
        %v399 = vshrl.u32 %v398, 7
        %v400 = vsub.s32 0, %v399
        %v401 = vrot.slane %v383, %v400
        %v403 = vsel %vm395, %v401, 0.0
        %v404 = vsel %vm396, %v401, 0.0
        %v405 = vadd.s32 %v386, 1
        %v406 = vlaneseq
        %v407 = vshrl.u32 %v406, 7
        %v408 = vsub.s32 0, %v407
        %v409 = vrot.slane %v405, %v408
        %vm410 = vcmp.eq.s32.totalorder %v389, %v409
        %vm411 = vcmp.eq.s32.totalorder %v390, %v409
        %v413 = vlaneseq
        %v414 = vshrl.u32 %v413, 7
        %v415 = vsub.s32 0, %v414
        %v416 = vrot.slane %v382, %v415
        %v418 = vsel %vm410, %v416, 0.0
        %v419 = vsel %vm411, %v416, 0.0
        %v420 = vadd.f32 %v403, %v418
        %v421 = vadd.f32 %v404, %v419
        %v422 = vlaneseq
        %v423 = vshrl.u32 %v422, 7
        %v424 = vsub.s32 0, %v423
        %v425 = vrot.slane %v387, %v424
        %vm426 = vcmp.eq.s32.totalorder %v389, %v425
        %vm427 = vcmp.eq.s32.totalorder %v390, %v425
        %v429 = vlaneseq
        %v430 = vshrl.u32 %v429, 7
        %v431 = vsub.s32 0, %v430
        %v432 = vrot.slane %v385, %v431
        %v434 = vsel %vm426, %v432, 0.0
        %v435 = vsel %vm427, %v432, 0.0
        %v436 = vadd.s32 %v387, 1
        %v437 = vlaneseq
        %v438 = vshrl.u32 %v437, 7
        %v439 = vsub.s32 0, %v438
        %v440 = vrot.slane %v436, %v439
        %vm441 = vcmp.eq.s32.totalorder %v389, %v440
        %vm442 = vcmp.eq.s32.totalorder %v390, %v440
        %v444 = vlaneseq
        %v445 = vshrl.u32 %v444, 7
        %v446 = vsub.s32 0, %v445
        %v447 = vrot.slane %v384, %v446
        %v449 = vsel %vm441, %v447, 0.0
        %v450 = vsel %vm442, %v447, 0.0
        %v451 = vadd.f32 %v434, %v449
        %v452 = vadd.f32 %v435, %v450
        %v453 = vld [vmem:[%s369] sm:$0xff]
        %v454 = vld [vmem:[%s369 + $0x8] sm:$0xff]
        %v455 = vld [vmem:[%s369 + $0x10] sm:$0xff]
        %v456 = vld [vmem:[%s369 + $0x18] sm:$0xff]
        %v457 = vld [vmem:[%s369 + $0x20] sm:$0xff]
        %v458 = vld [vmem:[%s369 + $0x28] sm:$0xff]
        %v459 = vld [vmem:[%s369 + $0x30] sm:$0xff]
        %v460 = vld [vmem:[%s369 + $0x38] sm:$0xff]
        %v461 = vld [vmem:[%s369 + $0x40] sm:$0xff]
        %v462 = vld [vmem:[%s369 + $0x48] sm:$0xff]
        %v463 = vld [vmem:[%s369 + $0x50] sm:$0xff]
        %v464 = vld [vmem:[%s369 + $0x58] sm:$0xff]
        %v465 = vld [vmem:[%s369 + $0x60] sm:$0xff]
        %v466 = vld [vmem:[%s369 + $0x68] sm:$0xff]
        %v467 = vld [vmem:[%s369 + $0x70] sm:$0xff]
        %v468 = vld [vmem:[%s369 + $0x78] sm:$0xff]
        %vm469 = vcmask 130048
        %v471 = vsel %vm469, %v453, 0
        %v474 = vsel %vm469, %v454, 0
        %v477 = vsel %vm469, %v455, 0
        %v480 = vsel %vm469, %v456, 0
        %v483 = vsel %vm469, %v457, 0
        %v486 = vsel %vm469, %v458, 0
        %v489 = vsel %vm469, %v459, 0
        %v492 = vsel %vm469, %v460, 0
        %v495 = vsel %vm469, %v461, 0
        %v498 = vsel %vm469, %v462, 0
        %v501 = vsel %vm469, %v463, 0
        %v504 = vsel %vm469, %v464, 0
        %v507 = vsel %vm469, %v465, 0
        %v510 = vsel %vm469, %v466, 0
        %v513 = vsel %vm469, %v467, 0
        %v516 = vsel %vm469, %v468, 0
        %518 = vmatprep.subr.mxu0 0.0
        %519 = vmatpush1.msra.mxu0 0.0
        %520 = vmatprep.subr.mxu0 0.0
        %521 = vmatpush1.msra.mxu0 0.0
        %522 = vmatprep.subr.mxu0 0.0
        %523 = vmatpush1.msra.mxu0 0.0
        %524 = vmatprep.subr.mxu0 0.0
        %525 = vmatpush1.msra.mxu0 0.0
        %526 = vmatprep.subr.mxu0 0.0
        %527 = vmatpush1.msra.mxu0 0.0
        %528 = vmatprep.subr.mxu0 0.0
        %529 = vmatpush1.msra.mxu0 0.0
        %530 = vmatprep.subr.mxu0 0.0
        %531 = vmatpush1.msra.mxu0 0.0
        %532 = vmatprep.subr.mxu0 0.0
        %533 = vmatpush1.msra.mxu0 0.0
        %534 = vmatprep.subr.mxu0 0.0
        %535 = vmatpush1.msra.mxu0 0.0
        %536 = vmatprep.subr.mxu0 0.0
        %537 = vmatpush1.msra.mxu0 0.0
        %538 = vmatprep.subr.mxu0 0.0
        %539 = vmatpush1.msra.mxu0 0.0
        %540 = vmatprep.subr.mxu0 0.0
        %541 = vmatpush1.msra.mxu0 0.0
        %542 = vmatprep.subr.mxu0 0.0
        %543 = vmatpush1.msra.mxu0 0.0
        %544 = vmatprep.subr.mxu0 0.0
        %545 = vmatpush1.msra.mxu0 0.0
        %546 = vmatprep.subr.mxu0 0.0
        %547 = vmatpush1.msra.mxu0 %v421
        %548 = vmatprep.subr.mxu0 0.0
        %549 = vmatpush1.msra.mxu0 %v420
        %550 = vmatprep.subr.mxu0 0.0
        %551 = vmatpush2.msra.mxu0 0.0
        %552 = vmatprep.subr.mxu0 0.0
        %553 = vmatpush2.msra.mxu0 0.0
        %554 = vmatprep.subr.mxu0 0.0
        %555 = vmatpush2.msra.mxu0 0.0
        %556 = vmatprep.subr.mxu0 0.0
        %557 = vmatpush2.msra.mxu0 0.0
        %558 = vmatprep.subr.mxu0 0.0
        %559 = vmatpush2.msra.mxu0 0.0
        %560 = vmatprep.subr.mxu0 0.0
        %561 = vmatpush2.msra.mxu0 0.0
        %562 = vmatprep.subr.mxu0 0.0
        %563 = vmatpush2.msra.mxu0 0.0
        %564 = vmatprep.subr.mxu0 0.0
        %565 = vmatpush2.msra.mxu0 0.0
        %566 = vmatprep.subr.mxu0 0.0
        %567 = vmatpush2.msra.mxu0 0.0
        %568 = vmatprep.subr.mxu0 0.0
        %569 = vmatpush2.msra.mxu0 0.0
        %570 = vmatprep.subr.mxu0 0.0
        %571 = vmatpush2.msra.mxu0 0.0
        %572 = vmatprep.subr.mxu0 0.0
        %573 = vmatpush2.msra.mxu0 0.0
        %574 = vmatprep.subr.mxu0 0.0
        %575 = vmatpush2.msra.mxu0 0.0
        %576 = vmatprep.subr.mxu0 0.0
        %577 = vmatpush2.msra.mxu0 0.0
        %578 = vmatprep.subr.mxu0 0.0
        %579 = vmatpush2.msra.mxu0 0.0
        %580 = vmatprep.subr.mxu0 0.0
        %581 = vmatpush2.msra.mxu0 0.0
        %582 = vmatprep.mubr.f32.mxu0 0.0
        %583 = vmatmul.mubr.f32.gmra.mxu0 %v471
        %v584 = vpop.f32.mrf.mxu0
        %v585 = vadd.f32 0.0, %v584
        %v586 = vpop.f32.mrf.mxu0
        %587 = vmatprep.mubr.f32.mxu0 0.0
        %588 = vmatmul.mubr.f32.gmra.mxu0 %v474
        %v589 = vpop.f32.mrf.mxu0
        %v590 = vadd.f32 0.0, %v589
        %v591 = vpop.f32.mrf.mxu0
        %592 = vmatprep.mubr.f32.mxu0 0.0
        %593 = vmatmul.mubr.f32.gmra.mxu0 %v477
        %v594 = vpop.f32.mrf.mxu0
        %v595 = vadd.f32 0.0, %v594
        %v596 = vpop.f32.mrf.mxu0
        %597 = vmatprep.mubr.f32.mxu0 0.0
        %598 = vmatmul.mubr.f32.gmra.mxu0 %v480
        %v599 = vpop.f32.mrf.mxu0
        %v600 = vadd.f32 0.0, %v599
        %v601 = vpop.f32.mrf.mxu0
        %602 = vmatprep.mubr.f32.mxu0 0.0
        %603 = vmatmul.mubr.f32.gmra.mxu0 %v483
        %v604 = vpop.f32.mrf.mxu0
        %v605 = vadd.f32 0.0, %v604
        %v606 = vpop.f32.mrf.mxu0
        %607 = vmatprep.mubr.f32.mxu0 0.0
        %608 = vmatmul.mubr.f32.gmra.mxu0 %v486
        %v609 = vpop.f32.mrf.mxu0
        %v610 = vadd.f32 0.0, %v609
        %v611 = vpop.f32.mrf.mxu0
        %612 = vmatprep.mubr.f32.mxu0 0.0
        %613 = vmatmul.mubr.f32.gmra.mxu0 %v489
        %v614 = vpop.f32.mrf.mxu0
        %v615 = vadd.f32 0.0, %v614
        %v616 = vpop.f32.mrf.mxu0
        %617 = vmatprep.mubr.f32.mxu0 0.0
        %618 = vmatmul.mubr.f32.gmra.mxu0 %v492
        %v619 = vpop.f32.mrf.mxu0
        %v620 = vadd.f32 0.0, %v619
        %v621 = vpop.f32.mrf.mxu0
        %622 = vmatprep.mubr.f32.mxu0 0.0
        %623 = vmatmul.mubr.f32.gmra.mxu0 %v495
        %v624 = vpop.f32.mrf.mxu0
        %v625 = vadd.f32 0.0, %v624
        %v626 = vpop.f32.mrf.mxu0
        %627 = vmatprep.mubr.f32.mxu0 0.0
        %628 = vmatmul.mubr.f32.gmra.mxu0 %v498
        %v629 = vpop.f32.mrf.mxu0
        %v630 = vadd.f32 0.0, %v629
        %v631 = vpop.f32.mrf.mxu0
        %632 = vmatprep.mubr.f32.mxu0 0.0
        %633 = vmatmul.mubr.f32.gmra.mxu0 %v501
        %v634 = vpop.f32.mrf.mxu0
        %v635 = vadd.f32 0.0, %v634
        %v636 = vpop.f32.mrf.mxu0
        %637 = vmatprep.mubr.f32.mxu0 0.0
        %638 = vmatmul.mubr.f32.gmra.mxu0 %v504
        %v639 = vpop.f32.mrf.mxu0
        %v640 = vadd.f32 0.0, %v639
        %v641 = vpop.f32.mrf.mxu0
        %642 = vmatprep.mubr.f32.mxu0 0.0
        %643 = vmatmul.mubr.f32.gmra.mxu0 %v507
        %v644 = vpop.f32.mrf.mxu0
        %v645 = vadd.f32 0.0, %v644
        %v646 = vpop.f32.mrf.mxu0
        %647 = vmatprep.mubr.f32.mxu0 0.0
        %648 = vmatmul.mubr.f32.gmra.mxu0 %v510
        %v649 = vpop.f32.mrf.mxu0
        %v650 = vadd.f32 0.0, %v649
        %v651 = vpop.f32.mrf.mxu0
        %652 = vmatprep.mubr.f32.mxu0 0.0
        %653 = vmatmul.mubr.f32.gmra.mxu0 %v513
        %v654 = vpop.f32.mrf.mxu0
        %v655 = vadd.f32 0.0, %v654
        %v656 = vpop.f32.mrf.mxu0
        %657 = vmatprep.mubr.f32.mxu0 0.0
        %658 = vmatmul.mubr.f32.gmra.mxu0 %v516
        %v659 = vpop.f32.mrf.mxu0
        %v660 = vadd.f32 0.0, %v659
        %v661 = vpop.f32.mrf.mxu0
        %662 = vdwg.mxu0
        %v663 = vmul.f32 %v585, %v451
        %v664 = vmul.f32 %v590, %v452
        %v665 = vmul.f32 %v595, %v451
        %v666 = vmul.f32 %v600, %v452
        %v667 = vmul.f32 %v605, %v451
        %v668 = vmul.f32 %v610, %v452
        %v669 = vmul.f32 %v615, %v451
        %v670 = vmul.f32 %v620, %v452
        %v671 = vmul.f32 %v625, %v451
        %v672 = vmul.f32 %v630, %v452
        %v673 = vmul.f32 %v635, %v451
        %v674 = vmul.f32 %v640, %v452
        %v675 = vmul.f32 %v645, %v451
        %v676 = vmul.f32 %v650, %v452
        %v677 = vmul.f32 %v655, %v451
        %v678 = vmul.f32 %v660, %v452
        %v679 = vadd.f32 %v663, %v664
        %v680 = vrot.slane %v679, 4
        %v681 = vadd.f32 %v679, %v680
        %v682 = vrot.slane %v681, 2
        %v683 = vadd.f32 %v681, %v682
        %v684 = vrot.slane %v683, 1
        %v685 = vadd.f32 %v683, %v684
        %v686 = vadd.f32 %v665, %v666
        %v687 = vrot.slane %v686, 4
        %v688 = vadd.f32 %v686, %v687
        %v689 = vrot.slane %v688, 2
        %v690 = vadd.f32 %v688, %v689
        %v691 = vrot.slane %v690, 1
        %v692 = vadd.f32 %v690, %v691
        %v693 = vadd.f32 %v667, %v668
        %v694 = vrot.slane %v693, 4
        %v695 = vadd.f32 %v693, %v694
        %v696 = vrot.slane %v695, 2
        %v697 = vadd.f32 %v695, %v696
        %v698 = vrot.slane %v697, 1
        %v699 = vadd.f32 %v697, %v698
        %v700 = vadd.f32 %v669, %v670
        %v701 = vrot.slane %v700, 4
        %v702 = vadd.f32 %v700, %v701
        %v703 = vrot.slane %v702, 2
        %v704 = vadd.f32 %v702, %v703
        %v705 = vrot.slane %v704, 1
        %v706 = vadd.f32 %v704, %v705
        %v707 = vadd.f32 %v671, %v672
        %v708 = vrot.slane %v707, 4
        %v709 = vadd.f32 %v707, %v708
        %v710 = vrot.slane %v709, 2
        %v711 = vadd.f32 %v709, %v710
        %v712 = vrot.slane %v711, 1
        %v713 = vadd.f32 %v711, %v712
        %v714 = vadd.f32 %v673, %v674
        %v715 = vrot.slane %v714, 4
        %v716 = vadd.f32 %v714, %v715
        %v717 = vrot.slane %v716, 2
        %v718 = vadd.f32 %v716, %v717
        %v719 = vrot.slane %v718, 1
        %v720 = vadd.f32 %v718, %v719
        %v721 = vadd.f32 %v675, %v676
        %v722 = vrot.slane %v721, 4
        %v723 = vadd.f32 %v721, %v722
        %v724 = vrot.slane %v723, 2
        %v725 = vadd.f32 %v723, %v724
        %v726 = vrot.slane %v725, 1
        %v727 = vadd.f32 %v725, %v726
        %v728 = vadd.f32 %v677, %v678
        %v729 = vrot.slane %v728, 4
        %v730 = vadd.f32 %v728, %v729
        %v731 = vrot.slane %v730, 2
        %v732 = vadd.f32 %v730, %v731
        %v733 = vrot.slane %v732, 1
        %v734 = vadd.f32 %v732, %v733
        %v735 = vld [vmem:[%s377] sm:$0xff]
        %vm744 = vcmask 1041409
        %v745 = vsel %vm744, %v692, %v685
        %vm746 = vcmask 1042434
        %v747 = vsel %vm746, %v699, %v745
        %vm748 = vcmask 1043459
        %v749 = vsel %vm748, %v706, %v747
        %vm750 = vcmask 1044484
        %v751 = vsel %vm750, %v713, %v749
        %vm752 = vcmask 1045509
        %v753 = vsel %vm752, %v720, %v751
        %vm754 = vcmask 1046534
        %v755 = vsel %vm754, %v727, %v753
        %vm756 = vcmask 1047559
        %v757 = vsel %vm756, %v734, %v755
        %v759 = vld [vmem:[%s4] sm:$0xff]
        %v761 = vsel %vm469, %v759, 0
        %763 = vmatprep.subr.mxu0 0.0
        %764 = vmatpush1.msra.mxu0 0.0
        %765 = vmatprep.subr.mxu0 0.0
        %766 = vmatpush1.msra.mxu0 0.0
        %767 = vmatprep.subr.mxu0 0.0
        %768 = vmatpush1.msra.mxu0 0.0
        %769 = vmatprep.subr.mxu0 0.0
        %770 = vmatpush1.msra.mxu0 0.0
        %771 = vmatprep.subr.mxu0 0.0
        %772 = vmatpush1.msra.mxu0 0.0
        %773 = vmatprep.subr.mxu0 0.0
        %774 = vmatpush1.msra.mxu0 0.0
        %775 = vmatprep.subr.mxu0 0.0
        %776 = vmatpush1.msra.mxu0 0.0
        %777 = vmatprep.subr.mxu0 0.0
        %778 = vmatpush1.msra.mxu0 0.0
        %779 = vmatprep.subr.mxu0 0.0
        %780 = vmatpush1.msra.mxu0 0.0
        %781 = vmatprep.subr.mxu0 0.0
        %782 = vmatpush1.msra.mxu0 0.0
        %783 = vmatprep.subr.mxu0 0.0
        %784 = vmatpush1.msra.mxu0 0.0
        %785 = vmatprep.subr.mxu0 0.0
        %786 = vmatpush1.msra.mxu0 0.0
        %787 = vmatprep.subr.mxu0 0.0
        %788 = vmatpush1.msra.mxu0 0.0
        %789 = vmatprep.subr.mxu0 0.0
        %790 = vmatpush1.msra.mxu0 0.0
        %791 = vmatprep.subr.mxu0 0.0
        %792 = vmatpush1.msra.mxu0 %v757
        %793 = vmatprep.subr.mxu0 0.0
        %794 = vmatpush1.msra.mxu0 %v735
        %795 = vmatprep.subr.mxu0 0.0
        %796 = vmatpush2.msra.mxu0 0.0
        %797 = vmatprep.subr.mxu0 0.0
        %798 = vmatpush2.msra.mxu0 0.0
        %799 = vmatprep.subr.mxu0 0.0
        %800 = vmatpush2.msra.mxu0 0.0
        %801 = vmatprep.subr.mxu0 0.0
        %802 = vmatpush2.msra.mxu0 0.0
        %803 = vmatprep.subr.mxu0 0.0
        %804 = vmatpush2.msra.mxu0 0.0
        %805 = vmatprep.subr.mxu0 0.0
        %806 = vmatpush2.msra.mxu0 0.0
        %807 = vmatprep.subr.mxu0 0.0
        %808 = vmatpush2.msra.mxu0 0.0
        %809 = vmatprep.subr.mxu0 0.0
        %810 = vmatpush2.msra.mxu0 0.0
        %811 = vmatprep.subr.mxu0 0.0
        %812 = vmatpush2.msra.mxu0 0.0
        %813 = vmatprep.subr.mxu0 0.0
        %814 = vmatpush2.msra.mxu0 0.0
        %815 = vmatprep.subr.mxu0 0.0
        %816 = vmatpush2.msra.mxu0 0.0
        %817 = vmatprep.subr.mxu0 0.0
        %818 = vmatpush2.msra.mxu0 0.0
        %819 = vmatprep.subr.mxu0 0.0
        %820 = vmatpush2.msra.mxu0 0.0
        %821 = vmatprep.subr.mxu0 0.0
        %822 = vmatpush2.msra.mxu0 0.0
        %823 = vmatprep.subr.mxu0 0.0
        %824 = vmatpush2.msra.mxu0 0.0
        %825 = vmatprep.subr.mxu0 0.0
        %826 = vmatpush2.msra.mxu0 0.0
        %827 = vmatprep.mubr.f32.mxu0 0.0
        %828 = vmatmul.mubr.f32.gmra.mxu0 %v761
        %v829 = vpop.f32.mrf.mxu0
        %v830 = vadd.f32 0.0, %v829
        %v831 = vpop.f32.mrf.mxu0
        %832 = vdwg.mxu0
        %v833 = vld [vmem:[%s5] sm:$0xff]
        %835 = vset.pattern.permute.xlu0 0
        %836 = vperm.xlu0 %835, %v833
        %v837 = vpop.permute.xlu0 %836
        %v839 = vmul.f32 %v830, %v837
        %v840 = vld [vmem:[%s6] sm:$0xff]
        %842 = vset.pattern.permute.xlu0 0
        %843 = vperm.xlu0 %842, %v840
        %v844 = vpop.permute.xlu0 %843
        %v846 = vadd.f32 %v839, %v844
        %v847 = vmax.f32 %v846, 0.0
        %848 = vst [vmem:[%s350] sm:$0xff] %v847
        %s849 = sand.u32 %s216, 1
        %s850 = scalar_lea.sflag [#allocation3], %s849
        %s851 = sand.u32 %s216, 1
        %s852 = smul.addr %s851, 8
        %s853 = scalar_lea.vmem [#allocation2], %s852
        // Predicated region
        $region49: #{tpu_custom_call.1} parent=47 // pred_check
          %p854 = pneg %p226
        $region50: #{tpu_custom_call.1} parent=47 // pred_check_branch
          %856 = sbr.rel (%p854) target = $region52
        $region51: #{tpu_custom_call.1} parent=47 // pred_region
          %s858 = ssub.s32 128, 128
          %859 = vsyncadd %s850, %s858
          %s860 = smul.addr %s25, 2
          %s861 = sadd.s32 %s26, %s860
          %s862 = smul.addr %s861, 128
          %s863 = scalar_lea.hbm %s7, %s862
          %s865 = sshll.u32 %s853, 4
          %s866 = int_to_ptr.vmem [resolvable:$true] %s865
          %868 = dma.vmem_to_hbm [thread:$0]  %s866, 128, %s863, %s850
        $region52: #{tpu_custom_call.1} parent=47 // pred_fallthru
          _
      $region48: #{tpu_custom_call.1} parent=5 // pred_fallthru
        _
      %p869 = scmp.le.s32.totalorder 2, %s16
      // Predicated region
      $region53: #{tpu_custom_call.1} parent=5 // pred_check
        %p870 = pneg %p869
      $region54: #{tpu_custom_call.1} parent=5 // pred_check_branch
        %872 = sbr.rel (%p870) target = $region56
      $region55: #{tpu_custom_call.1} parent=5 // pred_region
        %s873 = ssub.s32 %s16, 2
        // Predicated region
        $region57: #{tpu_custom_call.1} parent=55 // pred_check
          %p874 = pneg %p232
        $region58: #{tpu_custom_call.1} parent=55 // pred_check_branch
          %876 = sbr.rel (%p874) target = $region60
        $region59: #{tpu_custom_call.1} parent=55 // pred_region
          %s877 = sand.u32 %s217, 1
          %s878 = scalar_lea.sflag [#allocation3], %s877
          %s879 = sand.u32 %s217, 1
          %s880 = smul.addr %s879, 8
          %s881 = scalar_lea.vmem [#allocation2], %s880
          %882 = dma.done %s878, 128
        $region60: #{tpu_custom_call.1} parent=55 // pred_fallthru
          _
      $region56: #{tpu_custom_call.1} parent=5 // pred_fallthru
        _
    $region6: #{tpu_custom_call.1} parent=1 // loop_footer
      %s20 = sadd.s32 1, %s16
    $region7: #{tpu_custom_call.1} parent=1 // loop_footer_branch
      %15 = sbr.rel target = $region3
    $region8: #{tpu_custom_call.1} parent=1 // loop_exit
      _
    %883 = vsyncpa [#allocation3], 1
    %s884 = scalar_lea.sflag [#allocation3], 1
    %885 = vsyncpa %s884, 1

</llo_original>
